<compile_context>
chip_gen: v5e
topology: v5e:2x2
jax: 0.10.0
libtpu: 0.0.40
codegen_flags: <defaults>
</compile_context>

<pallas_src>
import functools

import jax
import jax.numpy as jnp
from jax.experimental import pallas as pl
from jax.experimental.pallas import tpu as pltpu


def _round_up(x, m):
    return ((x + m - 1) // m) * m


def _label_smoothing_kernel(pred_ref, tgt_ref, out_ref, *,
                            confidence, off_val, num_classes,
                            tile_b, total_rows):
    i = pl.program_id(0)

    x = pred_ref[...].astype(jnp.float32)                       # (TB, C)

    # Numerically-stable log-softmax pieces (logp itself is never materialized).
    m = jnp.max(x, axis=-1, keepdims=True)                      # (TB, 1)
    shifted = x - m                                             # (TB, C)
    lse = jnp.log(jnp.sum(jnp.exp(shifted), axis=-1, keepdims=True))   # (TB, 1)
    sum_logp = jnp.sum(shifted, axis=-1, keepdims=True) - num_classes * lse

    # shifted[target] via iota-compare (no scatter/gather needed).
    start = pl.multiple_of(i * tile_b, 8)
    tgt = tgt_ref[pl.ds(start, tile_b), :]                      # (TB, 1) int32
    col = jax.lax.broadcasted_iota(jnp.int32, x.shape, 1)       # (TB, C)
    shifted_tgt = jnp.sum(jnp.where(col == tgt, shifted, 0.0),
                          axis=-1, keepdims=True)               # (TB, 1)
    logp_tgt = shifted_tgt - lse

    # -sum(true_dist * logp): true_dist = off everywhere, confidence at target.
    per_row = -off_val * sum_logp - (confidence - off_val) * logp_tgt

    # Mask tail rows of the last (possibly partial) batch block.
    row = i * tile_b + jax.lax.broadcasted_iota(jnp.int32, (tile_b, 1), 0)
    per_row = jnp.where(row < total_rows, per_row, 0.0)

    # Lane-dense per-block partial sum; the mean is finished in JAX.
    partial = jnp.sum(per_row, axis=0, keepdims=True)           # (1, 1)
    out_ref[...] = jnp.broadcast_to(partial.reshape(1, 1, 1), (1, 1, 128))


def _choose_tile_b(B, C, elem_bytes):
    """Largest batch tile that fits a conservative per-generation VMEM budget."""
    try:
        vmem_cap = int(getattr(pltpu.get_tpu_info(), "vmem_capacity_bytes",
                               64 * 1024 * 1024))
    except Exception:
        vmem_cap = 64 * 1024 * 1024            # v7x per-TC physical VMEM (smallest gen)
    budget = min(int(0.35 * vmem_cap), 40 * 1024 * 1024)
    # 2x double-buffered pred block + ~6 live (tile_b, C) f32 temps.
    per_row_bytes = C * (2 * elem_bytes + 6 * 4)
    tb = budget // max(per_row_bytes, 1)
    tb = max(8, min(int(tb), 2048))
    tb = min(tb, max(8, (B // 8) * 8))         # never exceed the batch
    tb = (tb // 8) * 8
    return tb, vmem_cap


def label_smoothing_loss(pred, target, *, classes, smoothing=0.1, tile_b=None):
    """pred: (B, C) float, target: (B,) int -> scalar float32 loss."""
    B, C = pred.shape
    assert C == classes
    confidence = 1.0 - smoothing
    off_val = smoothing / (classes - 1)
    elem_bytes = jnp.dtype(pred.dtype).itemsize

    if tile_b is None:
        tile_b, vmem_cap = _choose_tile_b(B, C, elem_bytes)
    else:
        _, vmem_cap = _choose_tile_b(B, C, elem_bytes)
    assert tile_b >= 8 and tile_b % 8 == 0

    num_blocks = pl.cdiv(B, tile_b)
    Bp = num_blocks * tile_b

    # Pad target once so the in-kernel pl.ds slice never goes out of bounds.
    tgt_padded = jnp.pad(target.astype(jnp.int32), (0, Bp - B)).reshape(Bp, 1)

    # Explicit VMEM limit so the tile choice ports across v5e / v6e / v7x.
    est = tile_b * C * (2 * elem_bytes + 6 * 4) + 2 * Bp * 4 + 4 * (1 << 20)
    vmem_limit = int(min(max(est, 16 * 1024 * 1024),
                         vmem_cap - 8 * 1024 * 1024))

    kernel = functools.partial(
        _label_smoothing_kernel,
        confidence=confidence, off_val=off_val, num_classes=C,
        tile_b=tile_b, total_rows=B)

    partials = pl.pallas_call(
        kernel,
        out_shape=jax.ShapeDtypeStruct((num_blocks, 1, 128), jnp.float32),
        grid_spec=pltpu.PrefetchScalarGridSpec(
            num_scalar_prefetch=0,
            grid=(num_blocks,),
            in_specs=[
                pl.BlockSpec((tile_b, C), lambda i: (i, 0)),
                pl.BlockSpec((Bp, 1), lambda i: (0, 0)),   # whole target, loaded once
            ],
            out_specs=pl.BlockSpec((1, 1, 128), lambda i: (i, 0, 0)),
        ),
        compiler_params=pltpu.CompilerParams(
            dimension_semantics=("parallel",),
            vmem_limit_bytes=vmem_limit),
    )(pred, tgt_padded)

    return jnp.sum(partials[:, 0, 0]) / jnp.float32(B)


def _reference(pred, target, C, smoothing):
    logp = jax.nn.log_softmax(pred.astype(jnp.float32), axis=-1)
    td = jnp.full(pred.shape, smoothing / (C - 1), dtype=jnp.float32)
    td = td.at[jnp.arange(pred.shape[0]), target].set(1.0 - smoothing)
    return jnp.mean(jnp.sum(-td * logp, axis=-1))


if __name__ == "__main__":
    key = jax.random.PRNGKey(0)
    C = 32
    smoothing = 0.1
    k1, k2, k3, k4 = jax.random.split(key, 4)

    # Main check: small batch, tile divides evenly.
    B = 16
    pred = jax.random.normal(k1, (B, C), dtype=jnp.float32)
    target = jax.random.randint(k2, (B,), 0, C, dtype=jnp.int32)
    loss = jax.block_until_ready(
        label_smoothing_loss(pred, target, classes=C, smoothing=smoothing))
    ref = _reference(pred, target, C, smoothing)
    assert jnp.allclose(loss, ref, rtol=1e-5, atol=1e-5), (loss, ref)

    # Ragged check: exercises cdiv grid + in-kernel tail-row masking.
    B2 = 13
    pred2 = jax.random.normal(k3, (B2, C), dtype=jnp.float32)
    target2 = jax.random.randint(k4, (B2,), 0, C, dtype=jnp.int32)
    loss2 = jax.block_until_ready(
        label_smoothing_loss(pred2, target2, classes=C, smoothing=smoothing))
    ref2 = _reference(pred2, target2, C, smoothing)
    assert jnp.allclose(loss2, ref2, rtol=1e-5, atol=1e-5), (loss2, ref2)

    print("KERNEL_OK")
</pallas_src>

<mosaic_0001>
module attributes {stable_mosaic.version = 11 : i64} {
  func.func @_label_smoothing_kernel(%arg0: i32, %arg1: memref<16x32xf32, #tpu.memory_space<vmem>>, %arg2: memref<16x1xi32, #tpu.memory_space<vmem>>, %arg3: memref<1x1x128xf32, #tpu.memory_space<vmem>>) attributes {dimension_semantics = [#tpu.dimension_semantics<parallel>], iteration_bounds = array<i64: 1>, scalar_prefetch = 0 : i64, scratch_operands = 0 : i64, tpu.core_type = #tpu.core_type<tc>, window_params = [{transform_indices = @transform_0, window_bounds = array<i64: 16, 32>}, {pipeline_mode = #tpu.pipeline_mode<synchronous>, transform_indices = @transform_1, window_bounds = array<i64: 16, 1>}, {transform_indices = @transform_2, window_bounds = array<i64: 1, 1, 128>}]} {
    %c0 = arith.constant 0 : index
    %c0_0 = arith.constant 0 : index
    %0 = vector.load %arg1[%c0, %c0_0] : memref<16x32xf32, #tpu.memory_space<vmem>>, vector<16x32xf32>
    %cst = arith.constant dense<0xFF800000> : vector<16xf32>
    %1 = vector.multi_reduction <maximumf>, %0, %cst [1] : vector<16x32xf32> to vector<16xf32>
    %2 = vector.shape_cast %1 : vector<16xf32> to vector<16x1xf32>
    %3 = vector.broadcast %2 : vector<16x1xf32> to vector<16x32xf32>
    %4 = arith.subf %0, %3 : vector<16x32xf32>
    %5 = math.exp %4 : vector<16x32xf32>
    %cst_1 = arith.constant dense<0.000000e+00> : vector<16xf32>
    %6 = vector.multi_reduction <add>, %5, %cst_1 [1] : vector<16x32xf32> to vector<16xf32>
    %7 = vector.shape_cast %6 : vector<16xf32> to vector<16x1xf32>
    %8 = math.log %7 : vector<16x1xf32>
    %cst_2 = arith.constant dense<0.000000e+00> : vector<16xf32>
    %9 = vector.multi_reduction <add>, %4, %cst_2 [1] : vector<16x32xf32> to vector<16xf32>
    %10 = vector.shape_cast %9 : vector<16xf32> to vector<16x1xf32>
    %cst_3 = arith.constant 3.200000e+01 : f32
    %11 = vector.broadcast %cst_3 : f32 to vector<16x1xf32>
    %12 = arith.mulf %11, %8 : vector<16x1xf32>
    %13 = arith.subf %10, %12 : vector<16x1xf32>
    %c16_i32 = arith.constant 16 : i32
    %14 = arith.muli %arg0, %c16_i32 : i32
    %15 = tpu.assume_multiple %14, 8 : i32
    %16 = arith.index_cast %15 : i32 to index
    %c0_4 = arith.constant 0 : index
    %17 = vector.load %arg2[%16, %c0_4] : memref<16x1xi32, #tpu.memory_space<vmem>>, vector<16x1xi32>
    %18 = tpu.iota {dimensions = array<i32: 1>} : vector<16x32xi32>
    %19 = vector.broadcast %17 : vector<16x1xi32> to vector<16x32xi32>
    %20 = arith.cmpi eq, %18, %19 : vector<16x32xi32>
    %cst_5 = arith.constant 0.000000e+00 : f32
    %21 = vector.broadcast %cst_5 : f32 to vector<16x32xf32>
    %22 = arith.select %20, %4, %21 : vector<16x32xi1>, vector<16x32xf32>
    %cst_6 = arith.constant dense<0.000000e+00> : vector<16xf32>
    %23 = vector.multi_reduction <add>, %22, %cst_6 [1] : vector<16x32xf32> to vector<16xf32>
    %24 = vector.shape_cast %23 : vector<16xf32> to vector<16x1xf32>
    %25 = arith.subf %24, %8 : vector<16x1xf32>
    %cst_7 = arith.constant -0.0032258064 : f32
    %26 = vector.broadcast %cst_7 : f32 to vector<16x1xf32>
    %27 = arith.mulf %26, %13 : vector<16x1xf32>
    %cst_8 = arith.constant 0.896774172 : f32
    %28 = vector.broadcast %cst_8 : f32 to vector<16x1xf32>
    %29 = arith.mulf %28, %25 : vector<16x1xf32>
    %30 = arith.subf %27, %29 : vector<16x1xf32>
    %c16_i32_9 = arith.constant 16 : i32
    %31 = arith.muli %arg0, %c16_i32_9 : i32
    %32 = tpu.iota {dimensions = array<i32: 0>} : vector<16x1xi32>
    %33 = vector.broadcast %31 : i32 to vector<16x1xi32>
    %34 = arith.addi %33, %32 : vector<16x1xi32>
    %c16_i32_10 = arith.constant 16 : i32
    %35 = vector.broadcast %c16_i32_10 : i32 to vector<16x1xi32>
    %36 = arith.cmpi slt, %34, %35 : vector<16x1xi32>
    %cst_11 = arith.constant 0.000000e+00 : f32
    %37 = vector.broadcast %cst_11 : f32 to vector<16x1xf32>
    %38 = arith.select %36, %30, %37 : vector<16x1xi1>, vector<16x1xf32>
    %cst_12 = arith.constant dense<0.000000e+00> : vector<1xf32>
    %39 = vector.multi_reduction <add>, %38, %cst_12 [0] : vector<16x1xf32> to vector<1xf32>
    %40 = vector.shape_cast %39 : vector<1xf32> to vector<1x1xf32>
    %41 = vector.shape_cast %40 : vector<1x1xf32> to vector<1x1x1xf32>
    %42 = vector.shape_cast %41 : vector<1x1x1xf32> to vector<1x1x1xf32>
    %43 = vector.broadcast %42 : vector<1x1x1xf32> to vector<1x1x128xf32>
    %c0_13 = arith.constant 0 : index
    %c0_14 = arith.constant 0 : index
    %c0_15 = arith.constant 0 : index
    %44 = vector.load %arg3[%c0_13, %c0_14, %c0_15] : memref<1x1x128xf32, #tpu.memory_space<vmem>>, vector<1x1x128xf32>
    tpu.vector_store %arg3[%c0_13, %c0_14, %c0_15], %43 {strides = array<i32>} : memref<1x1x128xf32, #tpu.memory_space<vmem>>, vector<1x1x128xf32>,
    return
  }
  func.func @transform_0(%arg0: i32) -> (i32, i32) {
    %c0_i32 = arith.constant 0 : i32
    %c0_i32_0 = arith.constant 0 : i32
    return %arg0, %c0_i32 : i32, i32
  }
  func.func @transform_1(%arg0: i32) -> (i32, i32) {
    %c0_i32 = arith.constant 0 : i32
    %c0_i32_0 = arith.constant 0 : i32
    %c0_i32_1 = arith.constant 0 : i32
    return %c0_i32, %c0_i32_0 : i32, i32
  }
  func.func @transform_2(%arg0: i32) -> (i32, i32, i32) {
    %c0_i32 = arith.constant 0 : i32
    %c0_i32_0 = arith.constant 0 : i32
    %c0_i32_1 = arith.constant 0 : i32
    return %arg0, %c0_i32, %c0_i32_0 : i32, i32, i32
  }
}

</mosaic_0001>

<llo_original>
// kernel: tpu_custom_call.1
$region0: #{tpu_custom_call.1}
  #allocation0 [shape = 'u32[]', space=smem, size = 0x4, offset = 0x4, fixed_abs, tag = 'smem constant byte address 0x4 - core index']
  #allocation1 [shape = 'u32[72,128]{1,0:T(1,128)}', space=vmem, size = 0x9000, scoped, tag = 'internal scratch']
  %s0 = inlined_call_operand.vmem [shape: f32[16,32], index: 0, kind: input, shape index: {}]
  %s1 = inlined_call_operand.vmem [shape: s32[16,1], index: 1, kind: input, shape index: {}]
  %s2 = inlined_call_operand.hbm [shape: f32[1,1,128], index: 2, kind: output, shape index: {}]
  %s3 = sld [smem:[#allocation0]]
  $region18: #{tpu_custom_call.1} parent=0
    _
  %s5 = ssub.s32 1, %s3
  %s6 = scalar_select 0, %s5, %s3
  $region1: #{tpu_custom_call.1} parent=0
    #allocation2 [shape = 'u8[512]{0}', space=vmem, size = 0x400, scoped, tag = 'output window, operand 0, single buffered']
    #allocation3 [shape = 's32[1]{0}', space=sflag, size = 0x4, scoped, tag = 'scoped memory for tpu_custom_call.1']
    %7 = vsyncpa [#allocation3], 0
    // Predicated region
    $region2: #{tpu_custom_call.1} parent=1 // pred_check
      _
    $region3: #{tpu_custom_call.1} parent=1 // pred_check_branch
      %9 = sbr.rel (0) target = $region5
    $region4: #{tpu_custom_call.1} parent=1 // pred_region
      _
    $region5: #{tpu_custom_call.1} parent=1 // pred_fallthru
      _
    // Predicated region
    $region6: #{tpu_custom_call.1} parent=1 // pred_check
      _
    $region7: #{tpu_custom_call.1} parent=1 // pred_check_branch
      %11 = sbr.rel (0) target = $region9
    $region8: #{tpu_custom_call.1} parent=1 // pred_region
      _
    $region9: #{tpu_custom_call.1} parent=1 // pred_fallthru
      _
    %v12 = vld [vmem:[%s0] sm:$0xff]
    %v13 = vld [vmem:[%s0 + $0x8] sm:$0xff]
    %vm14 = vcmask 261120
    %v15 = vsel %vm14, %v12, -inf
    %16 = vmax.xlane.f32.xlu0 %v15
    %v17 = vpop.xlane.xlu0 %16
    %v18 = vsel %vm14, %v13, -inf
    %19 = vmax.xlane.f32.xlu0 %v18
    %v20 = vpop.xlane.xlu0 %19
    %v21 = vsub.f32 %v12, %v17
    %v22 = vsub.f32 %v13, %v20
    %v23 = vmul.f32 %v21, 1.442695
    %v24 = vpow.pop %v23
    %v25 = vmul.f32 %v22, 1.442695
    %v26 = vpow.pop %v25
    %v27 = vsel %vm14, %v24, 0.0
    %28 = vadd.xlane.f32.xlu0 %v27
    %v29 = vpop.xlane.xlu0 %28
    %v30 = vsel %vm14, %v26, 0.0
    %31 = vadd.xlane.f32.xlu0 %v30
    %v32 = vpop.xlane.xlu0 %31
    %v33 = vlog2.pop %v29
    %v34 = vmul.f32 %v33, 0.6931472
    %v35 = vlog2.pop %v32
    %v36 = vmul.f32 %v35, 0.6931472
    %v37 = vsel %vm14, %v21, 0.0
    %38 = vadd.xlane.f32.xlu0 %v37
    %v39 = vpop.xlane.xlu0 %38
    %v40 = vsel %vm14, %v22, 0.0
    %41 = vadd.xlane.f32.xlu0 %v40
    %v42 = vpop.xlane.xlu0 %41
    %v43 = vmul.f32 %v34, 32.0
    %v44 = vmul.f32 %v36, 32.0
    %v45 = vsub.f32 %v39, %v43
    %v46 = vsub.f32 %v42, %v44
    %s47 = smul.u32 0, 16
    %s48 = scalar_lea.vmem %s1, %s47
    %v49 = vld [vmem:[%s48] sm:$0xff]
    %v50 = vld [vmem:[%s48 + $0x8] sm:$0xff]
    %v51 = vlaneseq
    %v52 = vand.u32 %v51, 127
    %53 = vset.pattern.permute.xlu0 0
    %54 = vperm.xlu0 %53, %v49
    %v55 = vpop.permute.xlu0 %54
    %56 = vset.pattern.permute.xlu0 0
    %57 = vperm.xlu0 %56, %v50
    %v58 = vpop.permute.xlu0 %57
    %vm59 = vcmp.eq.s32.totalorder %v52, %v55
    %vm60 = vcmp.eq.s32.totalorder %v52, %v58
    %v61 = vsel %vm59, %v21, 0.0
    %v62 = vsel %vm60, %v22, 0.0
    %v63 = vsel %vm14, %v61, 0.0
    %64 = vadd.xlane.f32.xlu0 %v63
    %v65 = vpop.xlane.xlu0 %64
    %v66 = vsel %vm14, %v62, 0.0
    %67 = vadd.xlane.f32.xlu0 %v66
    %v68 = vpop.xlane.xlu0 %67
    %v69 = vsub.f32 %v65, %v34
    %v70 = vsub.f32 %v68, %v36
    %v71 = vmul.f32 %v45, -0.0032258064
    %v72 = vmul.f32 %v46, -0.0032258064
    %v73 = vmul.f32 %v69, 0.8967742
    %v74 = vmul.f32 %v70, 0.8967742
    %v75 = vsub.f32 %v71, %v73
    %v76 = vsub.f32 %v72, %v74
    %v77 = vlaneseq
    %v78 = vshrl.u32 %v77, 7
    %v79 = vadd.s32 %v78, 8
    %v80 = vstv %s47
    %v81 = vadd.s32 %v80, %v78
    %v82 = vadd.s32 %v80, %v79
    %vm83 = vcmp.lt.s32.totalorder %v81, 16
    %vm84 = vcmp.lt.s32.totalorder %v82, 16
    %v85 = vsel %vm83, %v75, 0.0
    %v86 = vsel %vm84, %v76, 0.0
    %v87 = vadd.f32 %v85, %v86
    %v88 = vrot.slane %v87, 4
    %v89 = vadd.f32 %v87, %v88
    %v90 = vrot.slane %v89, 2
    %v91 = vadd.f32 %v89, %v90
    %v92 = vrot.slane %v91, 1
    %v93 = vadd.f32 %v91, %v92
    %94 = vst [vmem:[#allocation2] sm:$0x1] %v93
    // Predicated region
    $region10: #{tpu_custom_call.1} parent=1 // pred_check
      _
    $region11: #{tpu_custom_call.1} parent=1 // pred_check_branch
      %96 = sbr.rel (0) target = $region13
    $region12: #{tpu_custom_call.1} parent=1 // pred_region
      %98 = vsyncadd [#allocation3], 0
      %s100 = sshll.u32 [#allocation2], 4
      %s101 = int_to_ptr.vmem [resolvable:$true] %s100
      %s102 = sshll.u32 %s2, 4
      %s103 = int_to_ptr.hbm [resolvable:$true] %s102
      %105 = dma.vmem_to_hbm [thread:$0]  %s101, 16, %s103, [#allocation3]
    $region13: #{tpu_custom_call.1} parent=1 // pred_fallthru
      _
    // Predicated region
    $region14: #{tpu_custom_call.1} parent=1 // pred_check
      _
    $region15: #{tpu_custom_call.1} parent=1 // pred_check_branch
      %107 = sbr.rel (0) target = $region17
    $region16: #{tpu_custom_call.1} parent=1 // pred_region
      %109 = dma.done [#allocation3], 16
    $region17: #{tpu_custom_call.1} parent=1 // pred_fallthru
      _
    %110 = vsyncpa [#allocation3], 1

</llo_original>
